<compile_context>
chip_gen: v7x
topology: tpu7x:2x2x1
jax: 0.10.0
libtpu: 0.0.40
codegen_flags: <defaults>
</compile_context>

<pallas_src>
import jax
import jax.numpy as jnp
from jax.experimental import pallas as pl
from jax.experimental.pallas import tpu as pltpu


# ----------------------------------------------------------------------------
# Kernel
# ----------------------------------------------------------------------------
def node_policy_kernel(
    x_ref,          # [bt, 128] bf16   packed [resource | task | 0]
    w1_ref,         # [128, 256] bf16  fused (block-diag) encoder layer 1
    w2d1_ref,       # [256, 256] bf16  fused encoder layer 2 + decision layer 1
    wd2_ref,        # [256, 128] bf16  decision layer 2
    wd3_ref,        # [128, 128] bf16  decision head (zero-padded 16 -> 128 lanes)
    bias_ref,       # [1, 768]  f32    packed [b1(256) | b2d1(256) | bd2(128) | bd3(128)]
    out_ref,        # [bt, 128] bf16   padded logits
):
    f32 = jnp.float32
    bf16 = jnp.bfloat16

    # Static lane-aligned slices of the packed bias buffer (all offsets % 128 == 0).
    b1 = bias_ref[:, 0:256]
    b2d1 = bias_ref[:, 256:512]
    bd2 = bias_ref[:, 512:640]
    bd3 = bias_ref[:, 640:768]

    x = x_ref[...]                                                     # already bf16

    # Fused resource+task encoder layer 1: [bt,128] @ [128,256] -> [bt,256] = [r1|t1]
    h1 = jnp.dot(x, w1_ref[...], preferred_element_type=f32) + b1
    h1 = jnp.maximum(h1, 0.0)

    # (encoder layer 2 ∘ decision layer 1), fused since there is no ReLU between:
    # [bt,256] @ [256,256] -> [bt,256]
    d1 = jnp.dot(h1.astype(bf16), w2d1_ref[...], preferred_element_type=f32) + b2d1
    d1 = jnp.maximum(d1, 0.0)

    # Decision layer 2: [bt,256] @ [256,128] -> [bt,128]
    d2 = jnp.dot(d1.astype(bf16), wd2_ref[...], preferred_element_type=f32) + bd2
    d2 = jnp.maximum(d2, 0.0)

    # Head (lane-padded to 128): [bt,128] @ [128,128] -> [bt,128]
    logits = jnp.dot(d2.astype(bf16), wd3_ref[...], preferred_element_type=f32) + bd3

    out_ref[...] = logits.astype(out_ref.dtype)


# ----------------------------------------------------------------------------
# Parameters (logical layout mirroring the PyTorch module; W is [in, out])
# ----------------------------------------------------------------------------
def init_params(key, resource_features=32, task_features=64, num_node_actions=16):
    dims = [
        ("wr1", (resource_features, 128)), ("br1", (1, 128)),
        ("wr2", (128, 64)),                ("br2", (1, 64)),
        ("wt1", (task_features, 128)),     ("bt1", (1, 128)),
        ("wt2", (128, 64)),                ("bt2", (1, 64)),
        ("wd1", (128, 256)),               ("bd1", (1, 256)),
        ("wd2", (256, 128)),               ("bd2", (1, 128)),
        ("wd3", (128, num_node_actions)),  ("bd3", (1, num_node_actions)),
    ]
    params = {}
    keys = jax.random.split(key, len(dims))
    for k, (name, shape) in zip(keys, dims):
        params[name] = jax.random.normal(k, shape, dtype=jnp.float32) * 0.05
    return params


def pack_params(p, resource_features=32, task_features=64, num_node_actions=16):
    """Wrapper-side repacking (done once):
      - block-diagonal encoder fusion,
      - algebraic fold of encoder layer-2 into decision layer-1 (f32 product),
      - lane-padded head,
      - single packed f32 bias buffer,
      - bf16 weight cast.
    """
    RF, TF, NA = resource_features, task_features, num_node_actions
    f32, bf16 = jnp.float32, jnp.bfloat16

    # Fused encoder layer 1: rows 0:RF -> resource cols 0:128, rows RF:RF+TF -> task
    # cols 128:256, remaining (pad) rows zero.
    w1 = jnp.zeros((128, 256), f32)
    w1 = w1.at[0:RF, 0:128].set(p["wr1"])
    w1 = w1.at[RF:RF + TF, 128:256].set(p["wt1"])
    b1 = jnp.concatenate([p["br1"], p["bt1"]], axis=-1)          # [1, 256]

    # Block-diagonal encoder layer 2 ([r2 | t2]) ...
    w2 = jnp.zeros((256, 128), f32)
    w2 = w2.at[0:128, 0:64].set(p["wr2"])
    w2 = w2.at[128:256, 64:128].set(p["wt2"])
    b2 = jnp.concatenate([p["br2"], p["bt2"]], axis=-1)          # [1, 128]

    # ... folded into decision layer 1 (no ReLU between them):
    #   d1 = relu((h1 @ W2 + b2) @ Wd1 + bd1) = relu(h1 @ (W2 @ Wd1) + (b2 @ Wd1 + bd1))
    w2d1 = w2 @ p["wd1"]                                          # [256, 256] (f32)
    b2d1 = b2 @ p["wd1"] + p["bd1"]                               # [1, 256]

    # Head zero-padded num_actions -> 128 lanes (unmasked lane-dense stores).
    wd3 = jnp.zeros((128, 128), f32).at[:, :NA].set(p["wd3"])
    bd3 = jnp.zeros((1, 128), f32).at[:, :NA].set(p["bd3"])

    # One packed f32 bias buffer: [b1 | b2d1 | bd2 | bd3] = [1, 768]
    bias = jnp.concatenate([b1, b2d1, p["bd2"], bd3], axis=-1)

    return dict(
        w1=w1.astype(bf16),
        w2d1=w2d1.astype(bf16),
        wd2=p["wd2"].astype(bf16),
        wd3=wd3.astype(bf16),
        bias=bias,                     # stays f32
    )


# ----------------------------------------------------------------------------
# Wrapper
# ----------------------------------------------------------------------------
def node_policy_forward(resource_state, task_features, packed, num_node_actions=16):
    B, RF = resource_state.shape
    TF = task_features.shape[1]
    assert RF + TF <= 128
    bf16 = jnp.bfloat16

    # Batch-tile policy:
    #   * B > 512  : 512-row tiles (near-peak pipelined efficiency), pad B up.
    #   * B >= 256 : split into exactly 2 tiles so both v7x TensorCores get work.
    #   * B < 256  : single block; launch/weight-DMA latency dominates anyway.
    if B > 512:
        bt = 512
    elif B >= 256:
        half = (B + 1) // 2
        bt = ((half + 7) // 8) * 8
    else:
        bt = B
    B_pad = -(-B // bt) * bt
    grid = (B_pad // bt,)

    # Pack inputs into one lane-dense bf16 slab: [resource | task | 0] -> [B_pad, 128]
    x = jnp.zeros((B_pad, 128), bf16)
    x = x.at[:B, :RF].set(resource_state.astype(bf16))
    x = x.at[:B, RF:RF + TF].set(task_features.astype(bf16))

    w = packed
    weight_args = [w["w1"], w["w2d1"], w["wd2"], w["wd3"], w["bias"]]

    batch_map = lambda i: (i, 0)
    full_map = lambda i: (0, 0)

    in_specs = [pl.BlockSpec((bt, 128), batch_map)] + [
        pl.BlockSpec(a.shape, full_map) for a in weight_args
    ]
    out_spec = pl.BlockSpec((bt, 128), batch_map)

    # Advisory cost estimate for XLA scheduling.
    flops = 2 * B_pad * (128 * 256 + 256 * 256 + 256 * 128 + 128 * 128)
    weight_bytes = sum(int(a.size) * a.dtype.itemsize for a in weight_args)
    bytes_accessed = weight_bytes + 2 * B_pad * 128 * 2    # bf16 in + out slabs
    cost = pl.CostEstimate(flops=flops, transcendentals=0,
                           bytes_accessed=bytes_accessed)

    out_padded = pl.pallas_call(
        node_policy_kernel,
        out_shape=jax.ShapeDtypeStruct((B_pad, 128), bf16),
        grid=grid,
        in_specs=in_specs,
        out_specs=out_spec,
        compiler_params=pltpu.CompilerParams(
            dimension_semantics=("parallel",)),
        cost_estimate=cost,
    )(x, *weight_args)

    # Slice off batch padding + padded head lanes outside the kernel; return f32
    # to preserve the module's logit dtype contract. (Caller must slice before any
    # softmax/argmax — never apply them over the padded 128-lane output.)
    return out_padded[:B, :num_node_actions].astype(jnp.float32)


# ----------------------------------------------------------------------------
# Pure-JAX f32 reference (mirrors the PyTorch module exactly)
# ----------------------------------------------------------------------------
def reference_forward(resource_state, task_features, p):
    r = jnp.maximum(resource_state @ p["wr1"] + p["br1"], 0.0) @ p["wr2"] + p["br2"]
    t = jnp.maximum(task_features @ p["wt1"] + p["bt1"], 0.0) @ p["wt2"] + p["bt2"]
    c = jnp.concatenate([r, t], axis=-1)
    d = jnp.maximum(c @ p["wd1"] + p["bd1"], 0.0)
    d = jnp.maximum(d @ p["wd2"] + p["bd2"], 0.0)
    return d @ p["wd3"] + p["bd3"]


if __name__ == "__main__":
    key = jax.random.PRNGKey(0)
    k_params, k_res, k_task = jax.random.split(key, 3)

    B = 8
    resource_features = 32
    task_features_dim = 64
    num_node_actions = 16

    params = init_params(k_params, resource_features, task_features_dim, num_node_actions)
    packed = pack_params(params, resource_features, task_features_dim, num_node_actions)

    resource_state = jax.random.normal(k_res, (B, resource_features), dtype=jnp.float32)
    task_features = jax.random.normal(k_task, (B, task_features_dim), dtype=jnp.float32)

    out = node_policy_forward(resource_state, task_features, packed, num_node_actions)
    out = jax.block_until_ready(out)

    ref = reference_forward(resource_state, task_features, params)
    assert out.shape == (B, num_node_actions)
    # Tolerance vs. the f32 reference reflects bf16 matmul operands (f32 accumulation)
    # plus the bf16 output store; logits here have magnitude ~1e-1.
    assert jnp.allclose(out, ref, atol=2.5e-2, rtol=2.5e-2), "mismatch vs reference"

    print("KERNEL_OK")
</pallas_src>

<mosaic_0001>
module attributes {stable_mosaic.version = 11 : i64} {
  func.func @node_policy_kernel(%arg0: i32, %arg1: memref<8x128xbf16, #tpu.memory_space<vmem>>, %arg2: memref<128x256xbf16, #tpu.memory_space<vmem>>, %arg3: memref<256x256xbf16, #tpu.memory_space<vmem>>, %arg4: memref<256x128xbf16, #tpu.memory_space<vmem>>, %arg5: memref<128x128xbf16, #tpu.memory_space<vmem>>, %arg6: memref<1x768xf32, #tpu.memory_space<vmem>>, %arg7: memref<8x128xbf16, #tpu.memory_space<vmem>>) attributes {dimension_semantics = [#tpu.dimension_semantics<parallel>], iteration_bounds = array<i64: 1>, scalar_prefetch = 0 : i64, scratch_operands = 0 : i64, tpu.core_type = #tpu.core_type<tc>, window_params = [{transform_indices = @transform_0, window_bounds = array<i64: 8, 128>}, {pipeline_mode = #tpu.pipeline_mode<synchronous>, transform_indices = @transform_1, window_bounds = array<i64: 128, 256>}, {pipeline_mode = #tpu.pipeline_mode<synchronous>, transform_indices = @transform_2, window_bounds = array<i64: 256, 256>}, {pipeline_mode = #tpu.pipeline_mode<synchronous>, transform_indices = @transform_3, window_bounds = array<i64: 256, 128>}, {pipeline_mode = #tpu.pipeline_mode<synchronous>, transform_indices = @transform_4, window_bounds = array<i64: 128, 128>}, {pipeline_mode = #tpu.pipeline_mode<synchronous>, transform_indices = @transform_5, window_bounds = array<i64: 1, 768>}, {transform_indices = @transform_6, window_bounds = array<i64: 8, 128>}]} {
    %c0 = arith.constant 0 : index
    %c0_0 = arith.constant 0 : index
    %0 = vector.load %arg6[%c0, %c0_0] : memref<1x768xf32, #tpu.memory_space<vmem>>, vector<1x256xf32>
    %c0_1 = arith.constant 0 : index
    %c256 = arith.constant 256 : index
    %1 = vector.load %arg6[%c0_1, %c256] : memref<1x768xf32, #tpu.memory_space<vmem>>, vector<1x256xf32>
    %c0_2 = arith.constant 0 : index
    %c512 = arith.constant 512 : index
    %2 = vector.load %arg6[%c0_2, %c512] : memref<1x768xf32, #tpu.memory_space<vmem>>, vector<1x128xf32>
    %c0_3 = arith.constant 0 : index
    %c640 = arith.constant 640 : index
    %3 = vector.load %arg6[%c0_3, %c640] : memref<1x768xf32, #tpu.memory_space<vmem>>, vector<1x128xf32>
    %c0_4 = arith.constant 0 : index
    %c0_5 = arith.constant 0 : index
    %4 = vector.load %arg1[%c0_4, %c0_5] : memref<8x128xbf16, #tpu.memory_space<vmem>>, vector<8x128xbf16>
    %c0_6 = arith.constant 0 : index
    %c0_7 = arith.constant 0 : index
    %5 = vector.load %arg2[%c0_6, %c0_7] : memref<128x256xbf16, #tpu.memory_space<vmem>>, vector<128x256xbf16>
    %cst = arith.constant dense<0.000000e+00> : vector<8x256xf32>
    %6 = tpu.matmul %4, %5, %cst {dimension_numbers = #tpu.dot_dimension_numbers<[1], [0], [0], [1], [0, 0, 1, 1], [], []>} : vector<8x128xbf16>, vector<128x256xbf16>, vector<8x256xf32> -> vector<8x256xf32>
    %7 = vector.broadcast %0 : vector<1x256xf32> to vector<8x256xf32>
    %8 = arith.addf %6, %7 : vector<8x256xf32>
    %cst_8 = arith.constant 0.000000e+00 : f32
    %9 = vector.broadcast %cst_8 : f32 to vector<8x256xf32>
    %10 = arith.maximumf %8, %9 : vector<8x256xf32>
    %11 = arith.truncf %10 : vector<8x256xf32> to vector<8x256xbf16>
    %c0_9 = arith.constant 0 : index
    %c0_10 = arith.constant 0 : index
    %12 = vector.load %arg3[%c0_9, %c0_10] : memref<256x256xbf16, #tpu.memory_space<vmem>>, vector<256x256xbf16>
    %cst_11 = arith.constant dense<0.000000e+00> : vector<8x256xf32>
    %13 = tpu.matmul %11, %12, %cst_11 {dimension_numbers = #tpu.dot_dimension_numbers<[1], [0], [0], [1], [0, 0, 1, 1], [], []>} : vector<8x256xbf16>, vector<256x256xbf16>, vector<8x256xf32> -> vector<8x256xf32>
    %14 = vector.broadcast %1 : vector<1x256xf32> to vector<8x256xf32>
    %15 = arith.addf %13, %14 : vector<8x256xf32>
    %cst_12 = arith.constant 0.000000e+00 : f32
    %16 = vector.broadcast %cst_12 : f32 to vector<8x256xf32>
    %17 = arith.maximumf %15, %16 : vector<8x256xf32>
    %18 = arith.truncf %17 : vector<8x256xf32> to vector<8x256xbf16>
    %c0_13 = arith.constant 0 : index
    %c0_14 = arith.constant 0 : index
    %19 = vector.load %arg4[%c0_13, %c0_14] : memref<256x128xbf16, #tpu.memory_space<vmem>>, vector<256x128xbf16>
    %cst_15 = arith.constant dense<0.000000e+00> : vector<8x128xf32>
    %20 = tpu.matmul %18, %19, %cst_15 {dimension_numbers = #tpu.dot_dimension_numbers<[1], [0], [0], [1], [0, 0, 1, 1], [], []>} : vector<8x256xbf16>, vector<256x128xbf16>, vector<8x128xf32> -> vector<8x128xf32>
    %21 = vector.broadcast %2 : vector<1x128xf32> to vector<8x128xf32>
    %22 = arith.addf %20, %21 : vector<8x128xf32>
    %cst_16 = arith.constant 0.000000e+00 : f32
    %23 = vector.broadcast %cst_16 : f32 to vector<8x128xf32>
    %24 = arith.maximumf %22, %23 : vector<8x128xf32>
    %25 = arith.truncf %24 : vector<8x128xf32> to vector<8x128xbf16>
    %c0_17 = arith.constant 0 : index
    %c0_18 = arith.constant 0 : index
    %26 = vector.load %arg5[%c0_17, %c0_18] : memref<128x128xbf16, #tpu.memory_space<vmem>>, vector<128x128xbf16>
    %cst_19 = arith.constant dense<0.000000e+00> : vector<8x128xf32>
    %27 = tpu.matmul %25, %26, %cst_19 {dimension_numbers = #tpu.dot_dimension_numbers<[1], [0], [0], [1], [0, 0, 1, 1], [], []>} : vector<8x128xbf16>, vector<128x128xbf16>, vector<8x128xf32> -> vector<8x128xf32>
    %28 = vector.broadcast %3 : vector<1x128xf32> to vector<8x128xf32>
    %29 = arith.addf %27, %28 : vector<8x128xf32>
    %30 = arith.truncf %29 : vector<8x128xf32> to vector<8x128xbf16>
    %c0_20 = arith.constant 0 : index
    %c0_21 = arith.constant 0 : index
    %31 = vector.load %arg7[%c0_20, %c0_21] : memref<8x128xbf16, #tpu.memory_space<vmem>>, vector<8x128xbf16>
    tpu.vector_store %arg7[%c0_20, %c0_21], %30 {strides = array<i32>} : memref<8x128xbf16, #tpu.memory_space<vmem>>, vector<8x128xbf16>,
    return
  }
  func.func @transform_0(%arg0: i32) -> (i32, i32) {
    %c0_i32 = arith.constant 0 : i32
    %c0_i32_0 = arith.constant 0 : i32
    return %arg0, %c0_i32 : i32, i32
  }
  func.func @transform_1(%arg0: i32) -> (i32, i32) {
    %c0_i32 = arith.constant 0 : i32
    %c0_i32_0 = arith.constant 0 : i32
    %c0_i32_1 = arith.constant 0 : i32
    return %c0_i32, %c0_i32_0 : i32, i32
  }
  func.func @transform_2(%arg0: i32) -> (i32, i32) {
    %c0_i32 = arith.constant 0 : i32
    %c0_i32_0 = arith.constant 0 : i32
    %c0_i32_1 = arith.constant 0 : i32
    return %c0_i32, %c0_i32_0 : i32, i32
  }
  func.func @transform_3(%arg0: i32) -> (i32, i32) {
    %c0_i32 = arith.constant 0 : i32
    %c0_i32_0 = arith.constant 0 : i32
    %c0_i32_1 = arith.constant 0 : i32
    return %c0_i32, %c0_i32_0 : i32, i32
  }
  func.func @transform_4(%arg0: i32) -> (i32, i32) {
    %c0_i32 = arith.constant 0 : i32
    %c0_i32_0 = arith.constant 0 : i32
    %c0_i32_1 = arith.constant 0 : i32
    return %c0_i32, %c0_i32_0 : i32, i32
  }
  func.func @transform_5(%arg0: i32) -> (i32, i32) {
    %c0_i32 = arith.constant 0 : i32
    %c0_i32_0 = arith.constant 0 : i32
    %c0_i32_1 = arith.constant 0 : i32
    return %c0_i32, %c0_i32_0 : i32, i32
  }
  func.func @transform_6(%arg0: i32) -> (i32, i32) {
    %c0_i32 = arith.constant 0 : i32
    %c0_i32_0 = arith.constant 0 : i32
    return %arg0, %c0_i32 : i32, i32
  }
}

</mosaic_0001>

<llo_original>
// kernel: tpu_custom_call.1
$region0: #{tpu_custom_call.1}
  #allocation0 [shape = 'u32[]', space=smem, size = 0x4, offset = 0x4, fixed_abs, tag = 'smem constant byte address 0x4 - core index']
  #allocation1 [shape = 'u32[144,128]{1,0:T(1,128)}', space=vmem, size = 0x12000, scoped, tag = 'internal scratch']
  %s0 = inlined_call_operand.hbm [shape: bf16[8,128], index: 0, kind: input, shape index: {}]
  %s1 = inlined_call_operand.hbm [shape: bf16[128,256], index: 1, kind: input, shape index: {}]
  %s2 = inlined_call_operand.hbm [shape: bf16[256,256], index: 2, kind: input, shape index: {}]
  %s3 = inlined_call_operand.hbm [shape: bf16[256,128], index: 3, kind: input, shape index: {}]
  %s4 = inlined_call_operand.hbm [shape: bf16[128,128], index: 4, kind: input, shape index: {}]
  %s5 = inlined_call_operand.vmem [shape: f32[1,768], index: 5, kind: input, shape index: {}]
  %s6 = inlined_call_operand.hbm [shape: bf16[8,128], index: 6, kind: output, shape index: {}]
  %s7 = sld [smem:[#allocation0]]
  $region54: #{tpu_custom_call.1} parent=0
    _
  %s9 = ssub.s32 1, %s7
  %s10 = scalar_select 0, %s9, %s7
  $region1: #{tpu_custom_call.1} parent=0
    #allocation2 [shape = 'u8[2048]{0}', space=vmem, size = 0x800, scoped, tag = 'input window, operand 0, single buffered']
    #allocation3 [shape = 's32[1]{0}', space=sflag, size = 0x4, scoped, tag = 'scoped memory for tpu_custom_call.1']
    #allocation4 [shape = 's32[1]{0}', space=sflag, size = 0x4, scoped, tag = 'scoped memory for tpu_custom_call.1']
    #allocation5 [shape = 'u8[65536]{0}', space=vmem, size = 0x10000, scoped, tag = 'input window, operand 1, single buffered']
    #allocation6 [shape = 's32[1]{0}', space=sflag, size = 0x4, scoped, tag = 'scoped memory for tpu_custom_call.1']
    #allocation7 [shape = 'u8[131072]{0}', space=vmem, size = 0x20000, scoped, tag = 'input window, operand 2, single buffered']
    #allocation8 [shape = 'u8[65536]{0}', space=vmem, size = 0x10000, scoped, tag = 'input window, operand 3, single buffered']
    #allocation9 [shape = 's32[1]{0}', space=sflag, size = 0x4, scoped, tag = 'scoped memory for tpu_custom_call.1']
    #allocation10 [shape = 'u8[32768]{0}', space=vmem, size = 0x8000, scoped, tag = 'input window, operand 4, single buffered']
    #allocation11 [shape = 'u8[2048]{0}', space=vmem, size = 0x800, scoped, tag = 'output window, operand 0, single buffered']
    %11 = vsyncpa [#allocation3], 0
    %12 = vsyncpa [#allocation6], 0
    %13 = vsyncpa [#allocation9], 0
    %14 = vsyncpa [#allocation4], 0
    // Predicated region
    $region2: #{tpu_custom_call.1} parent=1 // pred_check
      _
    $region3: #{tpu_custom_call.1} parent=1 // pred_check_branch
      %16 = sbr.rel (0) target = $region5
    $region4: #{tpu_custom_call.1} parent=1 // pred_region
      %s18 = ssub.s32 64, 64
      %19 = vsyncadd [#allocation3], %s18
      %s21 = sshll.u32 [#allocation2], 4
      %s22 = int_to_ptr.vmem [resolvable:$true] %s21
      %24 = dma.hbm_to_vmem [thread:$0]  %s0, 64, %s22, [#allocation3]
    $region5: #{tpu_custom_call.1} parent=1 // pred_fallthru
      _
    // Predicated region
    $region6: #{tpu_custom_call.1} parent=1 // pred_check
      _
    $region7: #{tpu_custom_call.1} parent=1 // pred_check_branch
      %26 = sbr.rel (0) target = $region9
    $region8: #{tpu_custom_call.1} parent=1 // pred_region
      %s28 = ssub.s32 2048, 2048
      %29 = vsyncadd [#allocation6], %s28
      %s30 = sshll.u32 [#allocation5], 4
      %s31 = int_to_ptr.vmem [resolvable:$true] %s30
      %36 = dma.hbm_to_vmem [thread:$0]  %s1, 2048, %s31, [#allocation6], 128, 128, 8
    $region9: #{tpu_custom_call.1} parent=1 // pred_fallthru
      _
    // Predicated region
    $region10: #{tpu_custom_call.1} parent=1 // pred_check
      _
    $region11: #{tpu_custom_call.1} parent=1 // pred_check_branch
      %38 = sbr.rel (0) target = $region13
    $region12: #{tpu_custom_call.1} parent=1 // pred_region
      %s40 = ssub.s32 4096, 4096
      %41 = vsyncadd [#allocation6], %s40
      %s42 = sshll.u32 [#allocation7], 4
      %s43 = int_to_ptr.vmem [resolvable:$true] %s42
      %48 = dma.hbm_to_vmem [thread:$0]  %s2, 4096, %s43, [#allocation6], 128, 128, 8
    $region13: #{tpu_custom_call.1} parent=1 // pred_fallthru
      _
    // Predicated region
    $region14: #{tpu_custom_call.1} parent=1 // pred_check
      _
    $region15: #{tpu_custom_call.1} parent=1 // pred_check_branch
      %50 = sbr.rel (0) target = $region17
    $region16: #{tpu_custom_call.1} parent=1 // pred_region
      %s52 = ssub.s32 2048, 2048
      %53 = vsyncadd [#allocation9], %s52
      %s54 = sshll.u32 [#allocation8], 4
      %s55 = int_to_ptr.vmem [resolvable:$true] %s54
      %60 = dma.hbm_to_vmem [thread:$0]  %s3, 2048, %s55, [#allocation9], 64, 64, 4
    $region17: #{tpu_custom_call.1} parent=1 // pred_fallthru
      _
    // Predicated region
    $region18: #{tpu_custom_call.1} parent=1 // pred_check
      _
    $region19: #{tpu_custom_call.1} parent=1 // pred_check_branch
      %62 = sbr.rel (0) target = $region21
    $region20: #{tpu_custom_call.1} parent=1 // pred_region
      %s64 = ssub.s32 1024, 1024
      %65 = vsyncadd [#allocation9], %s64
      %s66 = sshll.u32 [#allocation10], 4
      %s67 = int_to_ptr.vmem [resolvable:$true] %s66
      %72 = dma.hbm_to_vmem [thread:$0]  %s4, 1024, %s67, [#allocation9], 64, 64, 4
    $region21: #{tpu_custom_call.1} parent=1 // pred_fallthru
      _
    // Predicated region
    $region22: #{tpu_custom_call.1} parent=1 // pred_check
      _
    $region23: #{tpu_custom_call.1} parent=1 // pred_check_branch
      %74 = sbr.rel (0) target = $region25
    $region24: #{tpu_custom_call.1} parent=1 // pred_region
      _
    $region25: #{tpu_custom_call.1} parent=1 // pred_fallthru
      _
    // Predicated region
    $region26: #{tpu_custom_call.1} parent=1 // pred_check
      _
    $region27: #{tpu_custom_call.1} parent=1 // pred_check_branch
      %76 = sbr.rel (0) target = $region29
    $region28: #{tpu_custom_call.1} parent=1 // pred_region
      %77 = dma.done [#allocation3], 64
    $region29: #{tpu_custom_call.1} parent=1 // pred_fallthru
      _
    // Predicated region
    $region30: #{tpu_custom_call.1} parent=1 // pred_check
      _
    $region31: #{tpu_custom_call.1} parent=1 // pred_check_branch
      %79 = sbr.rel (0) target = $region33
    $region32: #{tpu_custom_call.1} parent=1 // pred_region
      %80 = dma.done [#allocation6], 2048
    $region33: #{tpu_custom_call.1} parent=1 // pred_fallthru
      _
    // Predicated region
    $region34: #{tpu_custom_call.1} parent=1 // pred_check
      _
    $region35: #{tpu_custom_call.1} parent=1 // pred_check_branch
      %82 = sbr.rel (0) target = $region37
    $region36: #{tpu_custom_call.1} parent=1 // pred_region
      %83 = dma.done [#allocation6], 4096
    $region37: #{tpu_custom_call.1} parent=1 // pred_fallthru
      _
    // Predicated region
    $region38: #{tpu_custom_call.1} parent=1 // pred_check
      _
    $region39: #{tpu_custom_call.1} parent=1 // pred_check_branch
      %85 = sbr.rel (0) target = $region41
    $region40: #{tpu_custom_call.1} parent=1 // pred_region
      %86 = dma.done [#allocation9], 2048
    $region41: #{tpu_custom_call.1} parent=1 // pred_fallthru
      _
    // Predicated region
    $region42: #{tpu_custom_call.1} parent=1 // pred_check
      _
    $region43: #{tpu_custom_call.1} parent=1 // pred_check_branch
      %88 = sbr.rel (0) target = $region45
    $region44: #{tpu_custom_call.1} parent=1 // pred_region
      %89 = dma.done [#allocation9], 1024
    $region45: #{tpu_custom_call.1} parent=1 // pred_fallthru
      _
    %v91 = vld [vmem:[%s5] sm:$0x3]
    %v92 = vld [vmem:[%s5 + $0x2] sm:$0x3]
    %v93 = vld [vmem:[%s5 + $0x4] sm:$0x1]
    %v94 = vld [vmem:[%s5 + $0x5] sm:$0x1]
    %v95 = vld [vmem:[#allocation2] sm:$0xf]
    %v96 = vld [vmem:[#allocation5] sm:$0xff]
    %v97 = vld [vmem:[#allocation5 + $0x8] sm:$0xff]
    %v98 = vld [vmem:[#allocation5 + $0x10] sm:$0xff]
    %v99 = vld [vmem:[#allocation5 + $0x18] sm:$0xff]
    %v100 = vld [vmem:[#allocation5 + $0x20] sm:$0xff]
    %v101 = vld [vmem:[#allocation5 + $0x28] sm:$0xff]
    %v102 = vld [vmem:[#allocation5 + $0x30] sm:$0xff]
    %v103 = vld [vmem:[#allocation5 + $0x38] sm:$0xff]
    %v104 = vld [vmem:[#allocation5 + $0x40] sm:$0xff]
    %v105 = vld [vmem:[#allocation5 + $0x48] sm:$0xff]
    %v106 = vld [vmem:[#allocation5 + $0x50] sm:$0xff]
    %v107 = vld [vmem:[#allocation5 + $0x58] sm:$0xff]
    %v108 = vld [vmem:[#allocation5 + $0x60] sm:$0xff]
    %v109 = vld [vmem:[#allocation5 + $0x68] sm:$0xff]
    %v110 = vld [vmem:[#allocation5 + $0x70] sm:$0xff]
    %v111 = vld [vmem:[#allocation5 + $0x78] sm:$0xff]
    %v113 = vlaneseq
    %v114 = vshrl.u32 %v113, 7
    %v115 = vsub.s32 0, %v114
    %v116 = vrot.slane %v91, %v115
    %v117 = vlaneseq
    %v118 = vshrl.u32 %v117, 7
    %v119 = vsub.s32 1, %v118
    %v120 = vrot.slane %v91, %v119
    %v139 = vunpack.c.l.b16 %v96
    %v140 = vunpack.c.h.b16 %v96
    %v141 = vunpack.c.l.b16 %v97
    %v142 = vunpack.c.h.b16 %v97
    %v143 = vunpack.c.l.b16 %v98
    %v144 = vunpack.c.h.b16 %v98
    %v145 = vunpack.c.l.b16 %v99
    %v146 = vunpack.c.h.b16 %v99
    %v147 = vunpack.c.l.b16 %v100
    %v148 = vunpack.c.h.b16 %v100
    %v149 = vunpack.c.l.b16 %v101
    %v150 = vunpack.c.h.b16 %v101
    %v151 = vunpack.c.l.b16 %v102
    %v152 = vunpack.c.h.b16 %v102
    %v153 = vunpack.c.l.b16 %v103
    %v154 = vunpack.c.h.b16 %v103
    %v155 = vunpack.c.l.b16 %v104
    %v156 = vunpack.c.h.b16 %v104
    %v157 = vunpack.c.l.b16 %v105
    %v158 = vunpack.c.h.b16 %v105
    %v159 = vunpack.c.l.b16 %v106
    %v160 = vunpack.c.h.b16 %v106
    %v161 = vunpack.c.l.b16 %v107
    %v162 = vunpack.c.h.b16 %v107
    %v163 = vunpack.c.l.b16 %v108
    %v164 = vunpack.c.h.b16 %v108
    %v165 = vunpack.c.l.b16 %v109
    %v166 = vunpack.c.h.b16 %v109
    %v167 = vunpack.c.l.b16 %v110
    %v168 = vunpack.c.h.b16 %v110
    %v169 = vunpack.c.l.b16 %v111
    %v170 = vunpack.c.h.b16 %v111
    %v171 = vpack.c.b16 %v141, %v139
    %v172 = vpack.c.b16 %v142, %v140
    %v173 = vpack.c.b16 %v145, %v143
    %v174 = vpack.c.b16 %v146, %v144
    %v175 = vpack.c.b16 %v149, %v147
    %v176 = vpack.c.b16 %v150, %v148
    %v177 = vpack.c.b16 %v153, %v151
    %v178 = vpack.c.b16 %v154, %v152
    %v179 = vpack.c.b16 %v157, %v155
    %v180 = vpack.c.b16 %v158, %v156
    %v181 = vpack.c.b16 %v161, %v159
    %v182 = vpack.c.b16 %v162, %v160
    %v183 = vpack.c.b16 %v165, %v163
    %v184 = vpack.c.b16 %v166, %v164
    %v185 = vpack.c.b16 %v169, %v167
    %v186 = vpack.c.b16 %v170, %v168
    %203 = vmatprep.subr.bf16.mxu0 %v172
    %204 = vmatpush1.bf16.msra.mxu0 %v171
    %205 = vmatprep.subr.bf16.mxu0 %v174
    %206 = vmatpush1.bf16.msra.mxu0 %v173
    %207 = vmatprep.subr.bf16.mxu0 %v176
    %208 = vmatpush1.bf16.msra.mxu0 %v175
    %209 = vmatprep.subr.bf16.mxu0 %v178
    %210 = vmatpush1.bf16.msra.mxu0 %v177
    %211 = vmatprep.subr.bf16.mxu0 %v180
    %212 = vmatpush1.bf16.msra.mxu0 %v179
    %213 = vmatprep.subr.bf16.mxu0 %v182
    %214 = vmatpush1.bf16.msra.mxu0 %v181
    %215 = vmatprep.subr.bf16.mxu0 %v184
    %216 = vmatpush1.bf16.msra.mxu0 %v183
    %217 = vmatprep.subr.bf16.mxu0 %v186
    %218 = vmatpush1.bf16.msra.mxu0 %v185
    %219 = vmatprep.subr.bf16.mxu0 0
    %220 = vmatpush1.bf16.msra.mxu0 0
    %221 = vmatprep.subr.bf16.mxu0 0
    %222 = vmatpush1.bf16.msra.mxu0 0
    %223 = vmatprep.subr.bf16.mxu0 0
    %224 = vmatpush1.bf16.msra.mxu0 0
    %225 = vmatprep.subr.bf16.mxu0 0
    %226 = vmatpush1.bf16.msra.mxu0 0
    %227 = vmatprep.subr.bf16.mxu0 0
    %228 = vmatpush1.bf16.msra.mxu0 0
    %229 = vmatprep.subr.bf16.mxu0 0
    %230 = vmatpush1.bf16.msra.mxu0 0
    %231 = vmatprep.subr.bf16.mxu0 0
    %232 = vmatpush1.bf16.msra.mxu0 0
    %233 = vmatprep.subr.bf16.mxu0 0
    %234 = vmatpush1.bf16.msra.mxu0 0
    %235 = vmatprep.mubr.bf16.mxu0 0
    %236 = vmatmul.mubr.bf16.gmra.mrb[0].mxu0 %v95
    %v237 = vpop.f32.mrb[0].mxu0
    %v238 = vadd.f32 %v116, %v237
    %v239 = vpop.f32.mrb[0].mxu0
    %v240 = vadd.f32 %v120, %v239
    %v241 = vpop.f32.mrb[0].mxu0
    %v242 = vpop.f32.mrb[0].mxu0
    %243 = vdwg.mxu0
    %v244 = vmax.f32 %v238, 0.0
    %v245 = vmax.f32 %v240, 0.0
    %v246 = vpack.c.bf16 %v244, %v244
    %v247 = vpack.c.bf16 %v245, %v245
    %v248 = vld [vmem:[#allocation7] sm:$0xff]
    %v249 = vld [vmem:[#allocation7 + $0x8] sm:$0xff]
    %v250 = vld [vmem:[#allocation7 + $0x10] sm:$0xff]
    %v251 = vld [vmem:[#allocation7 + $0x18] sm:$0xff]
    %v252 = vld [vmem:[#allocation7 + $0x20] sm:$0xff]
    %v253 = vld [vmem:[#allocation7 + $0x28] sm:$0xff]
    %v254 = vld [vmem:[#allocation7 + $0x30] sm:$0xff]
    %v255 = vld [vmem:[#allocation7 + $0x38] sm:$0xff]
    %v256 = vld [vmem:[#allocation7 + $0x40] sm:$0xff]
    %v257 = vld [vmem:[#allocation7 + $0x48] sm:$0xff]
    %v258 = vld [vmem:[#allocation7 + $0x50] sm:$0xff]
    %v259 = vld [vmem:[#allocation7 + $0x58] sm:$0xff]
    %v260 = vld [vmem:[#allocation7 + $0x60] sm:$0xff]
    %v261 = vld [vmem:[#allocation7 + $0x68] sm:$0xff]
    %v262 = vld [vmem:[#allocation7 + $0x70] sm:$0xff]
    %v263 = vld [vmem:[#allocation7 + $0x78] sm:$0xff]
    %v264 = vld [vmem:[#allocation7 + $0x80] sm:$0xff]
    %v265 = vld [vmem:[#allocation7 + $0x88] sm:$0xff]
    %v266 = vld [vmem:[#allocation7 + $0x90] sm:$0xff]
    %v267 = vld [vmem:[#allocation7 + $0x98] sm:$0xff]
    %v268 = vld [vmem:[#allocation7 + $0xa0] sm:$0xff]
    %v269 = vld [vmem:[#allocation7 + $0xa8] sm:$0xff]
    %v270 = vld [vmem:[#allocation7 + $0xb0] sm:$0xff]
    %v271 = vld [vmem:[#allocation7 + $0xb8] sm:$0xff]
    %v272 = vld [vmem:[#allocation7 + $0xc0] sm:$0xff]
    %v273 = vld [vmem:[#allocation7 + $0xc8] sm:$0xff]
    %v274 = vld [vmem:[#allocation7 + $0xd0] sm:$0xff]
    %v275 = vld [vmem:[#allocation7 + $0xd8] sm:$0xff]
    %v276 = vld [vmem:[#allocation7 + $0xe0] sm:$0xff]
    %v277 = vld [vmem:[#allocation7 + $0xe8] sm:$0xff]
    %v278 = vld [vmem:[#allocation7 + $0xf0] sm:$0xff]
    %v279 = vld [vmem:[#allocation7 + $0xf8] sm:$0xff]
    %v281 = vlaneseq
    %v282 = vshrl.u32 %v281, 7
    %v283 = vsub.s32 0, %v282
    %v284 = vrot.slane %v92, %v283
    %v285 = vlaneseq
    %v286 = vshrl.u32 %v285, 7
    %v287 = vsub.s32 1, %v286
    %v288 = vrot.slane %v92, %v287
    %v323 = vunpack.c.l.b16 %v248
    %v324 = vunpack.c.h.b16 %v248
    %v325 = vunpack.c.l.b16 %v249
    %v326 = vunpack.c.h.b16 %v249
    %v327 = vunpack.c.l.b16 %v250
    %v328 = vunpack.c.h.b16 %v250
    %v329 = vunpack.c.l.b16 %v251
    %v330 = vunpack.c.h.b16 %v251
    %v331 = vunpack.c.l.b16 %v252
    %v332 = vunpack.c.h.b16 %v252
    %v333 = vunpack.c.l.b16 %v253
    %v334 = vunpack.c.h.b16 %v253
    %v335 = vunpack.c.l.b16 %v254
    %v336 = vunpack.c.h.b16 %v254
    %v337 = vunpack.c.l.b16 %v255
    %v338 = vunpack.c.h.b16 %v255
    %v339 = vunpack.c.l.b16 %v256
    %v340 = vunpack.c.h.b16 %v256
    %v341 = vunpack.c.l.b16 %v257
    %v342 = vunpack.c.h.b16 %v257
    %v343 = vunpack.c.l.b16 %v258
    %v344 = vunpack.c.h.b16 %v258
    %v345 = vunpack.c.l.b16 %v259
    %v346 = vunpack.c.h.b16 %v259
    %v347 = vunpack.c.l.b16 %v260
    %v348 = vunpack.c.h.b16 %v260
    %v349 = vunpack.c.l.b16 %v261
    %v350 = vunpack.c.h.b16 %v261
    %v351 = vunpack.c.l.b16 %v262
    %v352 = vunpack.c.h.b16 %v262
    %v353 = vunpack.c.l.b16 %v263
    %v354 = vunpack.c.h.b16 %v263
    %v355 = vunpack.c.l.b16 %v264
    %v356 = vunpack.c.h.b16 %v264
    %v357 = vunpack.c.l.b16 %v265
    %v358 = vunpack.c.h.b16 %v265
    %v359 = vunpack.c.l.b16 %v266
    %v360 = vunpack.c.h.b16 %v266
    %v361 = vunpack.c.l.b16 %v267
    %v362 = vunpack.c.h.b16 %v267
    %v363 = vunpack.c.l.b16 %v268
    %v364 = vunpack.c.h.b16 %v268
    %v365 = vunpack.c.l.b16 %v269
    %v366 = vunpack.c.h.b16 %v269
    %v367 = vunpack.c.l.b16 %v270
    %v368 = vunpack.c.h.b16 %v270
    %v369 = vunpack.c.l.b16 %v271
    %v370 = vunpack.c.h.b16 %v271
    %v371 = vunpack.c.l.b16 %v272
    %v372 = vunpack.c.h.b16 %v272
    %v373 = vunpack.c.l.b16 %v273
    %v374 = vunpack.c.h.b16 %v273
    %v375 = vunpack.c.l.b16 %v274
    %v376 = vunpack.c.h.b16 %v274
    %v377 = vunpack.c.l.b16 %v275
    %v378 = vunpack.c.h.b16 %v275
    %v379 = vunpack.c.l.b16 %v276
    %v380 = vunpack.c.h.b16 %v276
    %v381 = vunpack.c.l.b16 %v277
    %v382 = vunpack.c.h.b16 %v277
    %v383 = vunpack.c.l.b16 %v278
    %v384 = vunpack.c.h.b16 %v278
    %v385 = vunpack.c.l.b16 %v279
    %v386 = vunpack.c.h.b16 %v279
    %v387 = vpack.c.b16 %v325, %v323
    %v388 = vpack.c.b16 %v326, %v324
    %v389 = vpack.c.b16 %v329, %v327
    %v390 = vpack.c.b16 %v330, %v328
    %v391 = vpack.c.b16 %v333, %v331
    %v392 = vpack.c.b16 %v334, %v332
    %v393 = vpack.c.b16 %v337, %v335
    %v394 = vpack.c.b16 %v338, %v336
    %v395 = vpack.c.b16 %v341, %v339
    %v396 = vpack.c.b16 %v342, %v340
    %v397 = vpack.c.b16 %v345, %v343
    %v398 = vpack.c.b16 %v346, %v344
    %v399 = vpack.c.b16 %v349, %v347
    %v400 = vpack.c.b16 %v350, %v348
    %v401 = vpack.c.b16 %v353, %v351
    %v402 = vpack.c.b16 %v354, %v352
    %v403 = vpack.c.b16 %v357, %v355
    %v404 = vpack.c.b16 %v358, %v356
    %v405 = vpack.c.b16 %v361, %v359
    %v406 = vpack.c.b16 %v362, %v360
    %v407 = vpack.c.b16 %v365, %v363
    %v408 = vpack.c.b16 %v366, %v364
    %v409 = vpack.c.b16 %v369, %v367
    %v410 = vpack.c.b16 %v370, %v368
    %v411 = vpack.c.b16 %v373, %v371
    %v412 = vpack.c.b16 %v374, %v372
    %v413 = vpack.c.b16 %v377, %v375
    %v414 = vpack.c.b16 %v378, %v376
    %v415 = vpack.c.b16 %v381, %v379
    %v416 = vpack.c.b16 %v382, %v380
    %v417 = vpack.c.b16 %v385, %v383
    %v418 = vpack.c.b16 %v386, %v384
    %451 = vmatprep.subr.bf16.mxu0 %v388
    %452 = vmatpush1.bf16.msra.mxu0 %v387
    %453 = vmatprep.subr.bf16.mxu0 %v390
    %454 = vmatpush1.bf16.msra.mxu0 %v389
    %455 = vmatprep.subr.bf16.mxu0 %v392
    %456 = vmatpush1.bf16.msra.mxu0 %v391
    %457 = vmatprep.subr.bf16.mxu0 %v394
    %458 = vmatpush1.bf16.msra.mxu0 %v393
    %459 = vmatprep.subr.bf16.mxu0 %v396
    %460 = vmatpush1.bf16.msra.mxu0 %v395
    %461 = vmatprep.subr.bf16.mxu0 %v398
    %462 = vmatpush1.bf16.msra.mxu0 %v397
    %463 = vmatprep.subr.bf16.mxu0 %v400
    %464 = vmatpush1.bf16.msra.mxu0 %v399
    %465 = vmatprep.subr.bf16.mxu0 %v402
    %466 = vmatpush1.bf16.msra.mxu0 %v401
    %467 = vmatprep.subr.bf16.mxu0 %v404
    %468 = vmatpush1.bf16.msra.mxu0 %v403
    %469 = vmatprep.subr.bf16.mxu0 %v406
    %470 = vmatpush1.bf16.msra.mxu0 %v405
    %471 = vmatprep.subr.bf16.mxu0 %v408
    %472 = vmatpush1.bf16.msra.mxu0 %v407
    %473 = vmatprep.subr.bf16.mxu0 %v410
    %474 = vmatpush1.bf16.msra.mxu0 %v409
    %475 = vmatprep.subr.bf16.mxu0 %v412
    %476 = vmatpush1.bf16.msra.mxu0 %v411
    %477 = vmatprep.subr.bf16.mxu0 %v414
    %478 = vmatpush1.bf16.msra.mxu0 %v413
    %479 = vmatprep.subr.bf16.mxu0 %v416
    %480 = vmatpush1.bf16.msra.mxu0 %v415
    %481 = vmatprep.subr.bf16.mxu0 %v418
    %482 = vmatpush1.bf16.msra.mxu0 %v417
    %483 = vmatprep.mubr.bf16.mxu0 %v247
    %484 = vmatmul.mubr.bf16.gmra.mrb[0].mxu0 %v246
    %v485 = vpop.f32.mrb[0].mxu0
    %v486 = vadd.f32 %v284, %v485
    %v487 = vpop.f32.mrb[0].mxu0
    %v488 = vadd.f32 %v288, %v487
    %v489 = vpop.f32.mrb[0].mxu0
    %v490 = vpop.f32.mrb[0].mxu0
    %491 = vdwg.mxu0
    %v492 = vmax.f32 %v486, 0.0
    %v493 = vmax.f32 %v488, 0.0
    %v494 = vpack.c.bf16 %v492, %v492
    %v495 = vpack.c.bf16 %v493, %v493
    %v496 = vld [vmem:[#allocation8] sm:$0xf]
    %v497 = vld [vmem:[#allocation8 + $0x4] sm:$0xf]
    %v498 = vld [vmem:[#allocation8 + $0x8] sm:$0xf]
    %v499 = vld [vmem:[#allocation8 + $0xc] sm:$0xf]
    %v500 = vld [vmem:[#allocation8 + $0x10] sm:$0xf]
    %v501 = vld [vmem:[#allocation8 + $0x14] sm:$0xf]
    %v502 = vld [vmem:[#allocation8 + $0x18] sm:$0xf]
    %v503 = vld [vmem:[#allocation8 + $0x1c] sm:$0xf]
    %v504 = vld [vmem:[#allocation8 + $0x20] sm:$0xf]
    %v505 = vld [vmem:[#allocation8 + $0x24] sm:$0xf]
    %v506 = vld [vmem:[#allocation8 + $0x28] sm:$0xf]
    %v507 = vld [vmem:[#allocation8 + $0x2c] sm:$0xf]
    %v508 = vld [vmem:[#allocation8 + $0x30] sm:$0xf]
    %v509 = vld [vmem:[#allocation8 + $0x34] sm:$0xf]
    %v510 = vld [vmem:[#allocation8 + $0x38] sm:$0xf]
    %v511 = vld [vmem:[#allocation8 + $0x3c] sm:$0xf]
    %v512 = vld [vmem:[#allocation8 + $0x40] sm:$0xf]
    %v513 = vld [vmem:[#allocation8 + $0x44] sm:$0xf]
    %v514 = vld [vmem:[#allocation8 + $0x48] sm:$0xf]
    %v515 = vld [vmem:[#allocation8 + $0x4c] sm:$0xf]
    %v516 = vld [vmem:[#allocation8 + $0x50] sm:$0xf]
    %v517 = vld [vmem:[#allocation8 + $0x54] sm:$0xf]
    %v518 = vld [vmem:[#allocation8 + $0x58] sm:$0xf]
    %v519 = vld [vmem:[#allocation8 + $0x5c] sm:$0xf]
    %v520 = vld [vmem:[#allocation8 + $0x60] sm:$0xf]
    %v521 = vld [vmem:[#allocation8 + $0x64] sm:$0xf]
    %v522 = vld [vmem:[#allocation8 + $0x68] sm:$0xf]
    %v523 = vld [vmem:[#allocation8 + $0x6c] sm:$0xf]
    %v524 = vld [vmem:[#allocation8 + $0x70] sm:$0xf]
    %v525 = vld [vmem:[#allocation8 + $0x74] sm:$0xf]
    %v526 = vld [vmem:[#allocation8 + $0x78] sm:$0xf]
    %v527 = vld [vmem:[#allocation8 + $0x7c] sm:$0xf]
    %v529 = vlaneseq
    %v530 = vshrl.u32 %v529, 7
    %v531 = vsub.s32 0, %v530
    %v532 = vrot.slane %v93, %v531
    %v566 = vunpack.c.l.b16 %v496
    %v567 = vunpack.c.l.b16 %v497
    %v568 = vunpack.c.l.b16 %v498
    %v569 = vunpack.c.l.b16 %v499
    %v570 = vunpack.c.l.b16 %v500
    %v571 = vunpack.c.l.b16 %v501
    %v572 = vunpack.c.l.b16 %v502
    %v573 = vunpack.c.l.b16 %v503
    %v574 = vunpack.c.l.b16 %v504
    %v575 = vunpack.c.l.b16 %v505
    %v576 = vunpack.c.l.b16 %v506
    %v577 = vunpack.c.l.b16 %v507
    %v578 = vunpack.c.l.b16 %v508
    %v579 = vunpack.c.l.b16 %v509
    %v580 = vunpack.c.l.b16 %v510
    %v581 = vunpack.c.l.b16 %v511
    %v582 = vunpack.c.l.b16 %v512
    %v583 = vunpack.c.l.b16 %v513
    %v584 = vunpack.c.l.b16 %v514
    %v585 = vunpack.c.l.b16 %v515
    %v586 = vunpack.c.l.b16 %v516
    %v587 = vunpack.c.l.b16 %v517
    %v588 = vunpack.c.l.b16 %v518
    %v589 = vunpack.c.l.b16 %v519
    %v590 = vunpack.c.l.b16 %v520
    %v591 = vunpack.c.l.b16 %v521
    %v592 = vunpack.c.l.b16 %v522
    %v593 = vunpack.c.l.b16 %v523
    %v594 = vunpack.c.l.b16 %v524
    %v595 = vunpack.c.l.b16 %v525
    %v596 = vunpack.c.l.b16 %v526
    %v597 = vunpack.c.l.b16 %v527
    %v598 = vpack.c.b16 %v567, %v566
    %v599 = vpack.c.b16 %v569, %v568
    %v600 = vpack.c.b16 %v571, %v570
    %v601 = vpack.c.b16 %v573, %v572
    %v602 = vpack.c.b16 %v575, %v574
    %v603 = vpack.c.b16 %v577, %v576
    %v604 = vpack.c.b16 %v579, %v578
    %v605 = vpack.c.b16 %v581, %v580
    %v606 = vpack.c.b16 %v583, %v582
    %v607 = vpack.c.b16 %v585, %v584
    %v608 = vpack.c.b16 %v587, %v586
    %v609 = vpack.c.b16 %v589, %v588
    %v610 = vpack.c.b16 %v591, %v590
    %v611 = vpack.c.b16 %v593, %v592
    %v612 = vpack.c.b16 %v595, %v594
    %v613 = vpack.c.b16 %v597, %v596
    %630 = vmatprep.subr.bf16.mxu0 0
    %631 = vmatpush1.bf16.msra.mxu0 %v598
    %632 = vmatprep.subr.bf16.mxu0 0
    %633 = vmatpush1.bf16.msra.mxu0 %v599
    %634 = vmatprep.subr.bf16.mxu0 0
    %635 = vmatpush1.bf16.msra.mxu0 %v600
    %636 = vmatprep.subr.bf16.mxu0 0
    %637 = vmatpush1.bf16.msra.mxu0 %v601
    %638 = vmatprep.subr.bf16.mxu0 0
    %639 = vmatpush1.bf16.msra.mxu0 %v602
    %640 = vmatprep.subr.bf16.mxu0 0
    %641 = vmatpush1.bf16.msra.mxu0 %v603
    %642 = vmatprep.subr.bf16.mxu0 0
    %643 = vmatpush1.bf16.msra.mxu0 %v604
    %644 = vmatprep.subr.bf16.mxu0 0
    %645 = vmatpush1.bf16.msra.mxu0 %v605
    %646 = vmatprep.subr.bf16.mxu0 0
    %647 = vmatpush1.bf16.msra.mxu0 %v606
    %648 = vmatprep.subr.bf16.mxu0 0
    %649 = vmatpush1.bf16.msra.mxu0 %v607
    %650 = vmatprep.subr.bf16.mxu0 0
    %651 = vmatpush1.bf16.msra.mxu0 %v608
    %652 = vmatprep.subr.bf16.mxu0 0
    %653 = vmatpush1.bf16.msra.mxu0 %v609
    %654 = vmatprep.subr.bf16.mxu0 0
    %655 = vmatpush1.bf16.msra.mxu0 %v610
    %656 = vmatprep.subr.bf16.mxu0 0
    %657 = vmatpush1.bf16.msra.mxu0 %v611
    %658 = vmatprep.subr.bf16.mxu0 0
    %659 = vmatpush1.bf16.msra.mxu0 %v612
    %660 = vmatprep.subr.bf16.mxu0 0
    %661 = vmatpush1.bf16.msra.mxu0 %v613
    %662 = vmatprep.mubr.bf16.mxu0 %v495
    %663 = vmatmul.mubr.bf16.gmra.mrb[0].mxu0 %v494
    %v664 = vpop.f32.mrb[0].mxu0
    %v665 = vadd.f32 %v532, %v664
    %v666 = vpop.f32.mrb[0].mxu0
    %v667 = vpop.f32.mrb[0].mxu0
    %v668 = vpop.f32.mrb[0].mxu0
    %669 = vdwg.mxu0
    %v670 = vmax.f32 %v665, 0.0
    %v671 = vpack.c.bf16 %v670, %v670
    %v672 = vld [vmem:[#allocation10] sm:$0xf]
    %v673 = vld [vmem:[#allocation10 + $0x4] sm:$0xf]
    %v674 = vld [vmem:[#allocation10 + $0x8] sm:$0xf]
    %v675 = vld [vmem:[#allocation10 + $0xc] sm:$0xf]
    %v676 = vld [vmem:[#allocation10 + $0x10] sm:$0xf]
    %v677 = vld [vmem:[#allocation10 + $0x14] sm:$0xf]
    %v678 = vld [vmem:[#allocation10 + $0x18] sm:$0xf]
    %v679 = vld [vmem:[#allocation10 + $0x1c] sm:$0xf]
    %v680 = vld [vmem:[#allocation10 + $0x20] sm:$0xf]
    %v681 = vld [vmem:[#allocation10 + $0x24] sm:$0xf]
    %v682 = vld [vmem:[#allocation10 + $0x28] sm:$0xf]
    %v683 = vld [vmem:[#allocation10 + $0x2c] sm:$0xf]
    %v684 = vld [vmem:[#allocation10 + $0x30] sm:$0xf]
    %v685 = vld [vmem:[#allocation10 + $0x34] sm:$0xf]
    %v686 = vld [vmem:[#allocation10 + $0x38] sm:$0xf]
    %v687 = vld [vmem:[#allocation10 + $0x3c] sm:$0xf]
    %v689 = vlaneseq
    %v690 = vshrl.u32 %v689, 7
    %v691 = vsub.s32 0, %v690
    %v692 = vrot.slane %v94, %v691
    %v710 = vunpack.c.l.b16 %v672
    %v711 = vunpack.c.l.b16 %v673
    %v712 = vunpack.c.l.b16 %v674
    %v713 = vunpack.c.l.b16 %v675
    %v714 = vunpack.c.l.b16 %v676
    %v715 = vunpack.c.l.b16 %v677
    %v716 = vunpack.c.l.b16 %v678
    %v717 = vunpack.c.l.b16 %v679
    %v718 = vunpack.c.l.b16 %v680
    %v719 = vunpack.c.l.b16 %v681
    %v720 = vunpack.c.l.b16 %v682
    %v721 = vunpack.c.l.b16 %v683
    %v722 = vunpack.c.l.b16 %v684
    %v723 = vunpack.c.l.b16 %v685
    %v724 = vunpack.c.l.b16 %v686
    %v725 = vunpack.c.l.b16 %v687
    %v726 = vpack.c.b16 %v711, %v710
    %v727 = vpack.c.b16 %v713, %v712
    %v728 = vpack.c.b16 %v715, %v714
    %v729 = vpack.c.b16 %v717, %v716
    %v730 = vpack.c.b16 %v719, %v718
    %v731 = vpack.c.b16 %v721, %v720
    %v732 = vpack.c.b16 %v723, %v722
    %v733 = vpack.c.b16 %v725, %v724
    %742 = vmatprep.subr.bf16.mxu0 0
    %743 = vmatpush1.bf16.msra.mxu0 %v726
    %744 = vmatprep.subr.bf16.mxu0 0
    %745 = vmatpush1.bf16.msra.mxu0 %v727
    %746 = vmatprep.subr.bf16.mxu0 0
    %747 = vmatpush1.bf16.msra.mxu0 %v728
    %748 = vmatprep.subr.bf16.mxu0 0
    %749 = vmatpush1.bf16.msra.mxu0 %v729
    %750 = vmatprep.subr.bf16.mxu0 0
    %751 = vmatpush1.bf16.msra.mxu0 %v730
    %752 = vmatprep.subr.bf16.mxu0 0
    %753 = vmatpush1.bf16.msra.mxu0 %v731
    %754 = vmatprep.subr.bf16.mxu0 0
    %755 = vmatpush1.bf16.msra.mxu0 %v732
    %756 = vmatprep.subr.bf16.mxu0 0
    %757 = vmatpush1.bf16.msra.mxu0 %v733
    %758 = vmatprep.subr.bf16.mxu0 0
    %759 = vmatpush1.bf16.msra.mxu0 0
    %760 = vmatprep.subr.bf16.mxu0 0
    %761 = vmatpush1.bf16.msra.mxu0 0
    %762 = vmatprep.subr.bf16.mxu0 0
    %763 = vmatpush1.bf16.msra.mxu0 0
    %764 = vmatprep.subr.bf16.mxu0 0
    %765 = vmatpush1.bf16.msra.mxu0 0
    %766 = vmatprep.subr.bf16.mxu0 0
    %767 = vmatpush1.bf16.msra.mxu0 0
    %768 = vmatprep.subr.bf16.mxu0 0
    %769 = vmatpush1.bf16.msra.mxu0 0
    %770 = vmatprep.subr.bf16.mxu0 0
    %771 = vmatpush1.bf16.msra.mxu0 0
    %772 = vmatprep.subr.bf16.mxu0 0
    %773 = vmatpush1.bf16.msra.mxu0 0
    %774 = vmatprep.mubr.bf16.mxu0 0
    %775 = vmatmul.mubr.bf16.gmra.mrb[0].mxu0 %v671
    %v776 = vpop.f32.mrb[0].mxu0
    %v777 = vadd.f32 %v692, %v776
    %v778 = vpop.f32.mrb[0].mxu0
    %v779 = vpop.f32.mrb[0].mxu0
    %v780 = vpop.f32.mrb[0].mxu0
    %781 = vdwg.mxu0
    %v782 = vpack.c.bf16 %v777, %v777
    %783 = vst [vmem:[#allocation11] sm:$0xf] %v782
    // Predicated region
    $region46: #{tpu_custom_call.1} parent=1 // pred_check
      _
    $region47: #{tpu_custom_call.1} parent=1 // pred_check_branch
      %785 = sbr.rel (0) target = $region49
    $region48: #{tpu_custom_call.1} parent=1 // pred_region
      %s787 = ssub.s32 64, 64
      %788 = vsyncadd [#allocation4], %s787
      %s790 = sshll.u32 [#allocation11], 4
      %s791 = int_to_ptr.vmem [resolvable:$true] %s790
      %793 = dma.vmem_to_hbm [thread:$0]  %s791, 64, %s6, [#allocation4]
    $region49: #{tpu_custom_call.1} parent=1 // pred_fallthru
      _
    // Predicated region
    $region50: #{tpu_custom_call.1} parent=1 // pred_check
      _
    $region51: #{tpu_custom_call.1} parent=1 // pred_check_branch
      %795 = sbr.rel (0) target = $region53
    $region52: #{tpu_custom_call.1} parent=1 // pred_region
      %796 = dma.done [#allocation4], 64
    $region53: #{tpu_custom_call.1} parent=1 // pred_fallthru
      _
    %797 = vsyncpa [#allocation3], 1
    %798 = vsyncpa [#allocation6], 1
    %799 = vsyncpa [#allocation9], 1
    %800 = vsyncpa [#allocation4], 1

</llo_original>
